<compile_context>
chip_gen: v5e
topology: v5e:2x2
jax: 0.10.0
libtpu: 0.0.40
codegen_flags: <defaults>
</compile_context>

<pallas_src>
import functools
import math

import jax
import jax.numpy as jnp
from jax.experimental import pallas as pl
from jax.experimental.pallas import tpu as pltpu


# Full-block f32-sized temporaries assumed live at once when sizing the NC tile
# (x, two rolled copies, dh/dw, masked-square accumulator).
_N_F32_TMPS = 5


def _apply_power(sq, power):
    """Given sq = dh^2 + dw^2 (f32), return (sqrt(sq)) ** power, specialized."""
    if power == 2:
        return sq                      # sqrt then square cancel: no EUP work
    nrm = jnp.sqrt(sq)
    if power == 1:
        return nrm
    if isinstance(power, int) and power > 1:
        out = nrm                      # repeated VALU multiplies, no exp/log
        for _ in range(power - 1):
            out = out * nrm
        return out
    return nrm ** power                # generic real power (nrm >= 0, safe)


def _tv_loss_kernel(mh_ref, mw_ref, x_ref, o_ref, *, w_pad, power, inv_hw,
                    diff_dtype):
    """Flat (TNC, H*W_pad) kernel.  H*W_pad is a multiple of 128 (lane-aligned)."""
    x = x_ref[...].astype(diff_dtype)          # bf16 on v6e/v7x, else f32
    hw = x.shape[-1]
    # Neighbours via lane rotation (XLU slot, not VALU).  hw is a multiple of
    # 128, so the rotation wraps exactly at the logical width; wrapped entries
    # are killed by the precomputed edge masks below.
    x_p1 = pltpu.roll(x, shift=hw - 1, axis=1)       # neighbour at +1 (next col)
    x_pw = pltpu.roll(x, shift=hw - w_pad, axis=1)   # neighbour at +W (next row)
    dw = (x_p1 - x).astype(jnp.float32)
    dh = (x_pw - x).astype(jnp.float32)
    # Precomputed (1, hw) f32 edge masks (constant index_map -> DMA'd once):
    # no per-element iota / modulo / compare work on the VPU.
    sq = mh_ref[...] * (dh * dh) + mw_ref[...] * (dw * dw)
    val = _apply_power(sq, power)
    # mean over (H, W) == single sum * 1/(H*W)   (logical H*W, not padded)
    o_ref[...] = jnp.sum(val, axis=1, keepdims=True) * inv_hw


def _tpu_config():
    """Generation-aware tiling / VMEM config (v7x has only 64 MiB VMEM per TC)."""
    kind = ""
    try:
        kind = jax.devices()[0].device_kind.lower()
    except Exception:
        pass
    if "v7" in kind:
        return dict(budget=16 << 20, vmem_limit=40 << 20, bf16_native=True)
    if "v6" in kind:
        return dict(budget=32 << 20, vmem_limit=64 << 20, bf16_native=True)
    if "v5" in kind:
        # v5e has no bf16 VALU: keep the upcast-first path.
        return dict(budget=32 << 20, vmem_limit=64 << 20, bf16_native=False)
    return dict(budget=8 << 20, vmem_limit=32 << 20, bf16_native=False)


def _pick_tnc(nc, hw_pad, elem_bytes, budget_bytes):
    """Rows per block, sized against the full live working set per row."""
    per_row = hw_pad * (2 * elem_bytes + _N_F32_TMPS * 4)
    tnc = max(1, budget_bytes // per_row)
    tnc = min(tnc, nc)
    if nc >= 16:
        # Keep the grid at >=2 steps (>=4 when NC allows) so both v7x
        # TensorCores get work and cross-step DMA/compute overlap exists.
        if nc >= 32:
            cap = max(8, ((nc // 4) // 8) * 8)
        else:
            cap = max(8, ((nc // 2) // 8) * 8)
        tnc = min(tnc, cap)
    if tnc < nc:
        tnc = max(8, (tnc // 8) * 8)   # second-to-last block dim: multiple of 8
    return min(tnc, nc)
    # TODO(synk): if even an 8-row block exceeds the budget (megapixel H*W),
    # an inner HW-chunk reduction (manual DMA or a second 'arbitrary' grid
    # axis) is required; not needed at these sizes.


def tv_loss_pallas(x, dims=(-2, -1), power=1):
    """Pallas TPU implementation of TVLoss.forward for NCHW inputs."""
    assert x.ndim == 4, "expected NCHW input"
    # TODO(synk): kernel specializes the default dims=(-2, -1); other dim sets
    # would need a different roll/mask axis selection.
    assert tuple(d % 4 for d in dims) == (2, 3), "kernel implements dims=(-2, -1)"
    n, c, h, w = map(int, x.shape)
    nc = n * c
    inv_hw = 1.0 / float(h * w)

    # Lane alignment: the kernel needs H*W_pad % 128 == 0 so rotations wrap at
    # the logical flattened width.  If not, zero-pad W minimally; the edge
    # masks keep the padded result exact.
    if (h * w) % 128 == 0:
        w_pad = w
        x2 = x.reshape(nc, h * w)
    else:
        step = 128 // math.gcd(h, 128)
        w_pad = ((w + step - 1) // step) * step
        x2 = jnp.pad(x, ((0, 0), (0, 0), (0, 0), (0, w_pad - w)))
        x2 = x2.reshape(nc, h * w_pad)
        # TODO(synk): for tiny feature maps (H*W < 128) a transposed layout
        # (NC on lanes, H*W on sublanes) would avoid this pad entirely.
    hw_pad = h * w_pad

    # Precomputed edge masks (fold the zero-padded torch.diff semantics into
    # two multiplies of the squared diffs).
    col = jnp.arange(hw_pad, dtype=jnp.int32)
    row_i = col // w_pad
    col_i = col % w_pad
    mh = ((row_i < h - 1) & (col_i < w)).astype(jnp.float32).reshape(1, hw_pad)
    mw = (col_i < w - 1).astype(jnp.float32).reshape(1, hw_pad)

    cfg = _tpu_config()
    elem = jnp.dtype(x.dtype).itemsize
    use_bf16_diffs = bool(cfg["bf16_native"]) and x.dtype == jnp.bfloat16
    diff_dtype = jnp.bfloat16 if use_bf16_diffs else jnp.float32

    tnc = _pick_tnc(nc, hw_pad, elem, cfg["budget"])
    grid = (pl.cdiv(nc, tnc),)

    cost = pl.CostEstimate(
        flops=8 * nc * hw_pad,                           # diffs, squares, masks, add, reduce
        transcendentals=0 if power == 2 else nc * hw_pad,  # sqrt only when needed
        bytes_accessed=nc * hw_pad * elem + 2 * hw_pad * 4 + nc * 4)
    cparams = pltpu.CompilerParams(
        dimension_semantics=("parallel",),               # independent NC blocks (v7x 2 TCs)
        vmem_limit_bytes=cfg["vmem_limit"])

    def _run(dd):
        return pl.pallas_call(
            functools.partial(_tv_loss_kernel, w_pad=w_pad, power=power,
                              inv_hw=inv_hw, diff_dtype=dd),
            out_shape=jax.ShapeDtypeStruct((nc, 1), jnp.float32),
            grid=grid,
            in_specs=[pl.BlockSpec((1, hw_pad), lambda i: (0, 0)),    # mh (DMA'd once)
                      pl.BlockSpec((1, hw_pad), lambda i: (0, 0)),    # mw (DMA'd once)
                      pl.BlockSpec((tnc, hw_pad), lambda i: (i, 0))], # x tiles
            out_specs=pl.BlockSpec((tnc, 1), lambda i: (i, 0)),
            compiler_params=cparams,
            cost_estimate=cost,
        )(mh, mw, x2)

    try:
        out = _run(diff_dtype)
    except Exception:
        if not use_bf16_diffs:
            raise
        # TODO(synk): bf16-native rolls/diffs not supported by this Mosaic
        # build; fall back to the proven upcast-first f32 path.
        out = _run(jnp.float32)

    return out.reshape(n, c).astype(x.dtype)


def tv_loss_ref(x, dims=(-2, -1), power=1):
    """Pure-JAX reference matching the PyTorch tv_loss exactly."""
    diffs = []
    for dim in dims:
        d = jnp.diff(x, axis=dim)
        pad_shape = list(x.shape)
        pad_shape[dim] = 1
        diffs.append(jnp.concatenate([d, jnp.zeros(pad_shape, x.dtype)], axis=dim))
    stacked = jnp.stack(diffs, axis=0)
    nrm = jnp.sqrt(jnp.sum(stacked * stacked, axis=0))
    return jnp.mean(nrm ** power, axis=dims)


if __name__ == "__main__":
    key = jax.random.PRNGKey(0)
    k1, k2, k3, k4 = jax.random.split(key, 4)

    # Case 1: (2, 4, 16, 16) f32, power=1 — aligned H*W (=256), f32 diffs.
    x1 = jax.random.normal(k1, (2, 4, 16, 16), dtype=jnp.float32)
    out1 = jax.block_until_ready(tv_loss_pallas(x1, dims=(-2, -1), power=1))
    ref1 = tv_loss_ref(x1)
    assert out1.shape == (2, 4), out1.shape
    assert jnp.allclose(out1, ref1, atol=1e-5, rtol=1e-5), (out1, ref1)

    # Case 2: power=2 path (skips the sqrt entirely).
    out1p2 = jax.block_until_ready(tv_loss_pallas(x1, power=2))
    ref1p2 = tv_loss_ref(x1, power=2)
    assert jnp.allclose(out1p2, ref1p2, atol=1e-5, rtol=1e-5), (out1p2, ref1p2)

    # Case 3: lane-aligned W (multiple of 128).
    x2 = jax.random.normal(k2, (1, 3, 8, 128), dtype=jnp.float32)
    out2 = jax.block_until_ready(tv_loss_pallas(x2))
    ref2 = tv_loss_ref(x2)
    assert jnp.allclose(out2, ref2, atol=1e-5, rtol=1e-5), (out2, ref2)

    # Case 4: unaligned H*W (10x10): minimal W zero-pad, masks keep it exact.
    x3 = jax.random.normal(k3, (2, 3, 10, 10), dtype=jnp.float32)
    out3 = jax.block_until_ready(tv_loss_pallas(x3))
    ref3 = tv_loss_ref(x3)
    assert jnp.allclose(out3, ref3, atol=1e-5, rtol=1e-5), (out3, ref3)

    # Case 5: native bf16 input — bf16 diffs on v6e/v7x, f32 accumulation.
    x4 = jax.random.normal(k4, (2, 4, 16, 16), dtype=jnp.bfloat16)
    out4 = jax.block_until_ready(tv_loss_pallas(x4))
    ref4 = tv_loss_ref(x4.astype(jnp.float32))
    assert jnp.allclose(out4.astype(jnp.float32), ref4, atol=2e-2, rtol=2e-2), (out4, ref4)

    print("KERNEL_OK")
</pallas_src>

<mosaic_0001>
module attributes {stable_mosaic.version = 11 : i64} {
  func.func @_tv_loss_kernel(%arg0: i32, %arg1: memref<1x256xf32, #tpu.memory_space<vmem>>, %arg2: memref<1x256xf32, #tpu.memory_space<vmem>>, %arg3: memref<8x256xf32, #tpu.memory_space<vmem>>, %arg4: memref<8x1xf32, #tpu.memory_space<vmem>>) attributes {dimension_semantics = [#tpu.dimension_semantics<parallel>], iteration_bounds = array<i64: 1>, scalar_prefetch = 0 : i64, scratch_operands = 0 : i64, tpu.core_type = #tpu.core_type<tc>, window_params = [{pipeline_mode = #tpu.pipeline_mode<synchronous>, transform_indices = @transform_0, window_bounds = array<i64: 1, 256>}, {pipeline_mode = #tpu.pipeline_mode<synchronous>, transform_indices = @transform_1, window_bounds = array<i64: 1, 256>}, {transform_indices = @transform_2, window_bounds = array<i64: 8, 256>}, {transform_indices = @transform_3, window_bounds = array<i64: 8, 1>}]} {
    %c0 = arith.constant 0 : index
    %c0_0 = arith.constant 0 : index
    %0 = vector.load %arg3[%c0, %c0_0] : memref<8x256xf32, #tpu.memory_space<vmem>>, vector<8x256xf32>
    %c255_i32 = arith.constant 255 : i32
    %1 = tpu.dynamic_rotate %0 by %c255_i32 dim 1 : vector<8x256xf32>, i32 -> vector<8x256xf32>
    %c240_i32 = arith.constant 240 : i32
    %2 = tpu.dynamic_rotate %0 by %c240_i32 dim 1 : vector<8x256xf32>, i32 -> vector<8x256xf32>
    %3 = arith.subf %1, %0 : vector<8x256xf32>
    %4 = arith.subf %2, %0 : vector<8x256xf32>
    %c0_1 = arith.constant 0 : index
    %c0_2 = arith.constant 0 : index
    %5 = vector.load %arg1[%c0_1, %c0_2] : memref<1x256xf32, #tpu.memory_space<vmem>>, vector<1x256xf32>
    %6 = arith.mulf %4, %4 : vector<8x256xf32>
    %7 = vector.broadcast %5 : vector<1x256xf32> to vector<8x256xf32>
    %8 = arith.mulf %7, %6 : vector<8x256xf32>
    %c0_3 = arith.constant 0 : index
    %c0_4 = arith.constant 0 : index
    %9 = vector.load %arg2[%c0_3, %c0_4] : memref<1x256xf32, #tpu.memory_space<vmem>>, vector<1x256xf32>
    %10 = arith.mulf %3, %3 : vector<8x256xf32>
    %11 = vector.broadcast %9 : vector<1x256xf32> to vector<8x256xf32>
    %12 = arith.mulf %11, %10 : vector<8x256xf32>
    %13 = arith.addf %8, %12 : vector<8x256xf32>
    %14 = math.sqrt %13 : vector<8x256xf32>
    %cst = arith.constant dense<0.000000e+00> : vector<8xf32>
    %15 = vector.multi_reduction <add>, %14, %cst [1] : vector<8x256xf32> to vector<8xf32>
    %16 = vector.shape_cast %15 : vector<8xf32> to vector<8x1xf32>
    %cst_5 = arith.constant 3.906250e-03 : f32
    %17 = vector.broadcast %cst_5 : f32 to vector<8x1xf32>
    %18 = arith.mulf %16, %17 : vector<8x1xf32>
    %c0_6 = arith.constant 0 : index
    %c0_7 = arith.constant 0 : index
    %19 = vector.load %arg4[%c0_6, %c0_7] : memref<8x1xf32, #tpu.memory_space<vmem>>, vector<8x1xf32>
    tpu.vector_store %arg4[%c0_6, %c0_7], %18 {strides = array<i32>} : memref<8x1xf32, #tpu.memory_space<vmem>>, vector<8x1xf32>,
    return
  }
  func.func @transform_0(%arg0: i32) -> (i32, i32) {
    %c0_i32 = arith.constant 0 : i32
    %c0_i32_0 = arith.constant 0 : i32
    %c0_i32_1 = arith.constant 0 : i32
    return %c0_i32, %c0_i32_0 : i32, i32
  }
  func.func @transform_1(%arg0: i32) -> (i32, i32) {
    %c0_i32 = arith.constant 0 : i32
    %c0_i32_0 = arith.constant 0 : i32
    %c0_i32_1 = arith.constant 0 : i32
    return %c0_i32, %c0_i32_0 : i32, i32
  }
  func.func @transform_2(%arg0: i32) -> (i32, i32) {
    %c0_i32 = arith.constant 0 : i32
    %c0_i32_0 = arith.constant 0 : i32
    return %arg0, %c0_i32 : i32, i32
  }
  func.func @transform_3(%arg0: i32) -> (i32, i32) {
    %c0_i32 = arith.constant 0 : i32
    %c0_i32_0 = arith.constant 0 : i32
    return %arg0, %c0_i32 : i32, i32
  }
}

</mosaic_0001>

<llo_original>
// kernel: tpu_custom_call.1
$region0: #{tpu_custom_call.1}
  #allocation0 [shape = 'u32[]', space=smem, size = 0x4, offset = 0x4, fixed_abs, tag = 'smem constant byte address 0x4 - core index']
  #allocation1 [shape = 'u32[72,128]{1,0:T(1,128)}', space=vmem, size = 0x9000, scoped, tag = 'internal scratch']
  %s0 = inlined_call_operand.hbm [shape: f32[1,256], index: 0, kind: input, shape index: {}]
  %s1 = inlined_call_operand.hbm [shape: f32[1,256], index: 1, kind: input, shape index: {}]
  %s2 = inlined_call_operand.hbm [shape: f32[8,256], index: 2, kind: input, shape index: {}]
  %s3 = inlined_call_operand.vmem [shape: f32[8,1], index: 3, kind: output, shape index: {}]
  %s4 = sld [smem:[#allocation0]]
  $region34: #{tpu_custom_call.1} parent=0
    _
  %s6 = ssub.s32 1, %s4
  %s7 = scalar_select 0, %s6, %s4
  $region1: #{tpu_custom_call.1} parent=0
    #allocation2 [shape = 'u8[1024]{0}', space=vmem, size = 0x400, scoped, tag = 'input window, operand 0, single buffered']
    #allocation3 [shape = 's32[1]{0}', space=sflag, size = 0x4, scoped, tag = 'scoped memory for tpu_custom_call.1']
    #allocation4 [shape = 'u8[1024]{0}', space=vmem, size = 0x400, scoped, tag = 'input window, operand 1, single buffered']
    #allocation5 [shape = 's32[1]{0}', space=sflag, size = 0x4, scoped, tag = 'scoped memory for tpu_custom_call.1']
    #allocation6 [shape = 'u8[8192]{0}', space=vmem, size = 0x2000, scoped, tag = 'input window, operand 2, single buffered']
    %8 = vsyncpa [#allocation3], 0
    %9 = vsyncpa [#allocation5], 0
    // Predicated region
    $region2: #{tpu_custom_call.1} parent=1 // pred_check
      _
    $region3: #{tpu_custom_call.1} parent=1 // pred_check_branch
      %11 = sbr.rel (0) target = $region5
    $region4: #{tpu_custom_call.1} parent=1 // pred_region
      %13 = vsyncadd [#allocation3], 0
      %s15 = sshll.u32 %s0, 4
      %s16 = int_to_ptr.hbm [resolvable:$true] %s15
      %s17 = sshll.u32 [#allocation2], 4
      %s18 = int_to_ptr.vmem [resolvable:$true] %s17
      %20 = dma.hbm_to_vmem [thread:$0]  %s16, 32, %s18, [#allocation3]
    $region5: #{tpu_custom_call.1} parent=1 // pred_fallthru
      _
    // Predicated region
    $region6: #{tpu_custom_call.1} parent=1 // pred_check
      _
    $region7: #{tpu_custom_call.1} parent=1 // pred_check_branch
      %22 = sbr.rel (0) target = $region9
    $region8: #{tpu_custom_call.1} parent=1 // pred_region
      %24 = vsyncadd [#allocation5], 0
      %s26 = sshll.u32 %s1, 4
      %s27 = int_to_ptr.hbm [resolvable:$true] %s26
      %s28 = sshll.u32 [#allocation4], 4
      %s29 = int_to_ptr.vmem [resolvable:$true] %s28
      %31 = dma.hbm_to_vmem [thread:$0]  %s27, 32, %s29, [#allocation5]
    $region9: #{tpu_custom_call.1} parent=1 // pred_fallthru
      _
    // Predicated region
    $region10: #{tpu_custom_call.1} parent=1 // pred_check
      _
    $region11: #{tpu_custom_call.1} parent=1 // pred_check_branch
      %33 = sbr.rel (0) target = $region13
    $region12: #{tpu_custom_call.1} parent=1 // pred_region
      %35 = vsyncadd [#allocation5], 0
      %s37 = sshll.u32 %s2, 4
      %s38 = int_to_ptr.hbm [resolvable:$true] %s37
      %s39 = sshll.u32 [#allocation6], 4
      %s40 = int_to_ptr.vmem [resolvable:$true] %s39
      %42 = dma.hbm_to_vmem [thread:$0]  %s38, 256, %s40, [#allocation5]
    $region13: #{tpu_custom_call.1} parent=1 // pred_fallthru
      _
    // Predicated region
    $region14: #{tpu_custom_call.1} parent=1 // pred_check
      _
    $region15: #{tpu_custom_call.1} parent=1 // pred_check_branch
      %44 = sbr.rel (0) target = $region17
    $region16: #{tpu_custom_call.1} parent=1 // pred_region
      %46 = dma.done [#allocation3], 32
    $region17: #{tpu_custom_call.1} parent=1 // pred_fallthru
      _
    // Predicated region
    $region18: #{tpu_custom_call.1} parent=1 // pred_check
      _
    $region19: #{tpu_custom_call.1} parent=1 // pred_check_branch
      %48 = sbr.rel (0) target = $region21
    $region20: #{tpu_custom_call.1} parent=1 // pred_region
      %50 = dma.done [#allocation5], 32
    $region21: #{tpu_custom_call.1} parent=1 // pred_fallthru
      _
    // Predicated region
    $region22: #{tpu_custom_call.1} parent=1 // pred_check
      _
    $region23: #{tpu_custom_call.1} parent=1 // pred_check_branch
      %52 = sbr.rel (0) target = $region25
    $region24: #{tpu_custom_call.1} parent=1 // pred_region
      %54 = dma.done [#allocation5], 256
    $region25: #{tpu_custom_call.1} parent=1 // pred_fallthru
      _
    %v55 = vld [vmem:[#allocation6] sm:$0xff]
    %v56 = vld [vmem:[#allocation6 + $0x8] sm:$0xff]
    %57 = vrot.lane.b32.xlu0 %v55, 127
    %v58 = vpop.permute.xlu0 %57
    %59 = vrot.lane.b32.xlu0 %v56, 127
    %v60 = vpop.permute.xlu0 %59
    %v61 = vlaneseq
    %v62 = vand.u32 %v61, 127
    %vm63 = vcmp.lt.s32.totalorder %v62, 127
    %v64 = vsel %vm63, %v58, %v60
    %v65 = vsel %vm63, %v60, %v58
    %66 = vrot.lane.b32.xlu0 %v55, 112
    %v67 = vpop.permute.xlu0 %66
    %68 = vrot.lane.b32.xlu0 %v56, 112
    %v69 = vpop.permute.xlu0 %68
    %vm70 = vcmp.lt.s32.totalorder %v62, 112
    %v71 = vsel %vm70, %v67, %v69
    %v72 = vsel %vm70, %v69, %v67
    %v73 = vsub.f32 %v64, %v55
    %v74 = vsub.f32 %v65, %v56
    %v75 = vsub.f32 %v71, %v55
    %v76 = vsub.f32 %v72, %v56
    %v77 = vld [vmem:[#allocation2] sm:$0x3]
    %v78 = vmul.f32 %v75, %v75
    %v79 = vmul.f32 %v76, %v76
    %v81 = vperm.slane %v77, 0
    %v82 = vperm.slane %v77, 1
    %v85 = vmul.f32 %v81, %v78
    %v86 = vmul.f32 %v82, %v79
    %v87 = vld [vmem:[#allocation4] sm:$0x3]
    %v88 = vmul.f32 %v73, %v73
    %v89 = vmul.f32 %v74, %v74
    %v91 = vperm.slane %v87, 0
    %v92 = vperm.slane %v87, 1
    %v95 = vmul.f32 %v91, %v88
    %v96 = vmul.f32 %v92, %v89
    %v97 = vadd.f32 %v85, %v95
    %v98 = vadd.f32 %v86, %v96
    %v99 = vrsqrt.pop %v97
    %v100 = vmul.f32 %v99, %v97
    %v101 = vmul.f32 %v100, %v99
    %v102 = vmul.f32 0.5, %v101
    %v103 = vsub.f32 1.5, %v102
    %v104 = vmul.f32 %v99, %v103
    %v105 = vmul.f32 %v97, %v104
    %vm106 = vcmp.eq.f32.partialorder %v97, inf
    %v107 = vsel %vm106, %v97, %v105
    %vm108 = vcmp.eq.f32.partialorder %v97, 0.0
    %v109 = vand.u32 %v97, 2147483648
    %v110 = vsel %vm108, %v109, %v107
    %v111 = vrsqrt.pop %v98
    %v112 = vmul.f32 %v111, %v98
    %v113 = vmul.f32 %v112, %v111
    %v114 = vmul.f32 0.5, %v113
    %v115 = vsub.f32 1.5, %v114
    %v116 = vmul.f32 %v111, %v115
    %v117 = vmul.f32 %v98, %v116
    %vm118 = vcmp.eq.f32.partialorder %v98, inf
    %v119 = vsel %vm118, %v98, %v117
    %vm120 = vcmp.eq.f32.partialorder %v98, 0.0
    %v121 = vand.u32 %v98, 2147483648
    %v122 = vsel %vm120, %v121, %v119
    %v123 = vadd.f32 %v110, %v122
    %124 = vadd.xlane.f32.xlu0 %v123
    %v125 = vpop.xlane.xlu0 %124
    %v126 = vmul.f32 %v125, 0.00390625
    %vm127 = vcmask 7168
    %128 = vst.msk [vmem:[%s3] sm:$0xff] %vm127, %v126
    // Predicated region
    $region26: #{tpu_custom_call.1} parent=1 // pred_check
      _
    $region27: #{tpu_custom_call.1} parent=1 // pred_check_branch
      %130 = sbr.rel (0) target = $region29
    $region28: #{tpu_custom_call.1} parent=1 // pred_region
      _
    $region29: #{tpu_custom_call.1} parent=1 // pred_fallthru
      _
    // Predicated region
    $region30: #{tpu_custom_call.1} parent=1 // pred_check
      _
    $region31: #{tpu_custom_call.1} parent=1 // pred_check_branch
      %132 = sbr.rel (0) target = $region33
    $region32: #{tpu_custom_call.1} parent=1 // pred_region
      _
    $region33: #{tpu_custom_call.1} parent=1 // pred_fallthru
      _
    %133 = vsyncpa [#allocation3], 1
    %134 = vsyncpa [#allocation5], 1

</llo_original>
